<compile_context>
chip_gen: v7x
topology: tpu7x:2x2x1
jax: 0.10.0
libtpu: 0.0.40
codegen_flags: <defaults>
</compile_context>

<pallas_src>
import functools

import jax
import jax.numpy as jnp
from jax.experimental import pallas as pl
from jax.experimental.pallas import tpu as pltpu


_PAD_COORD = 1.0e8          # sentinel coordinate for padded / ignored points
_BIG = 3.0e38               # "infinity" for the running-min accumulator
_TN_CAP = 512               # single-tile cap on the N (sublane) axis
_TM_CAP = 4096              # single-tile cap on the M (lane) axis
_TN_CANDIDATES = (512, 384, 256, 128)
_TM_CANDIDATES = (4096, 3072, 2048, 1536, 1024, 512, 256, 128)
_CHUNK_CANDIDATES = (512, 384, 256, 128)   # in-kernel lane chunk (must divide tm)


def _round_up(v, m):
    return -(-v // m) * m


def _pick_tile(size, cap, align, candidates, max_pad_frac=0.5):
    """Prefer one big tile; otherwise the largest candidate tile whose padding
    stays under max_pad_frac (falling back to the min-padding candidate)."""
    if size <= cap:
        t = _round_up(size, align)
        return t, t
    best = None
    for t in candidates:
        pad = _round_up(size, t)
        if best is None or pad < best[1]:
            best = (t, pad)
        if pad - size <= max_pad_frac * size:
            return t, pad
    return best


def _pick_chunk(tm):
    for c in _CHUNK_CANDIDATES:
        if tm % c == 0:
            return c
    return 128


def _prep_cloud(xyz, n_pad, valid_mask, is_query):
    """(B, n, 3) -> (B, n_pad, 8) f32 with the squared norms baked in.

    query rows  : [  x,   y,   z, ||p||^2, 1, 0, 0, 0]
    target rows : [-2x, -2y, -2z, 1, ||p||^2, 0, 0, 0]
    so that dot(query_row, target_row) == ||p_q - p_t||^2.  Padded / masked
    points sit at a far sentinel so they never win a nearest-neighbour min.
    """
    b, n, _ = xyz.shape
    p = xyz.astype(jnp.float32)
    if n_pad > n:
        p = jnp.concatenate([p, jnp.zeros((b, n_pad - n, 3), jnp.float32)], axis=1)
    keep = jnp.ones((b, n_pad), bool)
    if n_pad > n:
        keep = keep.at[:, n:].set(False)
    if valid_mask is not None:
        keep = keep.at[:, :n].set(valid_mask)
    far = jnp.array([_PAD_COORD, 0.0, 0.0], jnp.float32)
    p = jnp.where(keep[:, :, None], p, far)
    sq = jnp.sum(p * p, axis=2, keepdims=True)            # (B, n_pad, 1)
    one = jnp.ones_like(sq)
    zero = jnp.zeros_like(p)
    if is_query:
        return jnp.concatenate([p, sq, one, zero], axis=2)
    return jnp.concatenate([-2.0 * p, one, sq, zero], axis=2)


def _make_kernel(chunk):
    def kernel(x_ref, yt_ref, d1_ref, d2_ref, d1_acc):
        # x_ref : (1, TN, 8)       query points (norms baked in) for this N tile
        # yt_ref: (1, 8, TM)       pre-transposed target points for this M tile
        # d1_ref: (1, 1, TN)       L2 NN distances query -> target (per N tile)
        # d2_ref: (1, NUM_M, TM)   L2 NN distances target -> query; resident
        #                          across the grid -> running-min accumulator
        # d1_acc: (TN, 128) VMEM   lane-partial running min over the M tiles
        ni = pl.program_id(1)
        mi = pl.program_id(2)
        num_n = pl.num_programs(1)
        num_m = pl.num_programs(2)

        x = x_ref[0]                                       # (TN, 8)
        yt = yt_ref[0]                                     # (8, TM)
        tm = yt.shape[1]
        mrow = pl.ds(mi, 1)

        @pl.when(mi == 0)
        def _():
            d1_acc[...] = jnp.full(d1_acc.shape, _BIG, d1_acc.dtype)

        # Single pass over the (TN, TM) distances, CHUNK lanes at a time: the
        # full tile is never materialized, so nothing is spilled and re-read.
        for lo in range(0, tm, chunk):
            # Squared distances for this lane chunk, straight off the MXU
            # (norms + (-2) scale are baked into the 8-wide coordinate pad).
            d = jnp.dot(x, yt[:, lo:lo + chunk],
                        preferred_element_type=jnp.float32)     # (TN, CHUNK)

            # ---- dist1: fold CHUNK lanes to 128 with pure-VPU mins, accumulate.
            part = d[:, 0:128]
            for k in range(128, chunk, 128):
                part = jnp.minimum(part, d[:, k:k + 128])
            d1_acc[...] = jnp.minimum(d1_acc[...], part)

            # ---- dist2: running min in the resident, lane-dense output block.
            col_min = jnp.min(d, axis=0, keepdims=True)          # (1, CHUNK)

            @pl.when(ni == 0)
            def _():
                d2_ref[0, mrow, lo:lo + chunk] = col_min

            @pl.when(ni > 0)
            def _():
                d2_ref[0, mrow, lo:lo + chunk] = jnp.minimum(
                    d2_ref[0, mrow, lo:lo + chunk], col_min)

            @pl.when(ni == num_n - 1)
            def _():
                d2_ref[0, mrow, lo:lo + chunk] = jnp.sqrt(
                    jnp.maximum(d2_ref[0, mrow, lo:lo + chunk], 0.0))

        # ---- dist1 finalize: one cross-lane reduce + clamp + sqrt +
        #      sublane->lane relayout per N tile (last M step only).
        @pl.when(mi == num_m - 1)
        def _():
            d1_ref[0, 0, :] = jnp.sqrt(
                jnp.maximum(jnp.min(d1_acc[...], axis=1), 0.0))

    return kernel


@functools.partial(jax.jit, static_argnames=("ignore_zeros",))
def chamfer_distance_l1(xyz1, xyz2, ignore_zeros=False):
    """Forward pass of ChamferDistanceL1.  xyz1: (B, N, 3), xyz2: (B, M, 3)."""
    B, N, _ = xyz1.shape
    _, M, _ = xyz2.shape

    if ignore_zeros and B == 1:
        valid1 = jnp.sum(xyz1, axis=2) != 0        # mirrors torch.sum(...).ne(0)
        valid2 = jnp.sum(xyz2, axis=2) != 0
    else:
        valid1 = valid2 = None

    tn, n_pad = _pick_tile(N, _TN_CAP, 8, _TN_CANDIDATES)
    tm, m_pad = _pick_tile(M, _TM_CAP, 128, _TM_CANDIDATES)
    num_n = n_pad // tn
    num_m = m_pad // tm
    chunk = _pick_chunk(tm)

    # v7x: when the batch axis alone would leave one TensorCore idle (B == 1),
    # split the N-tile range across the leading "parallel" grid axis and keep
    # per-core dist2 partials (min-combined below).  Sequential — and thus
    # harmless — on single-core v5e / v6e.
    core_split = (B == 1) and (num_n >= 2)
    if core_split:
        if num_n % 2:
            num_n += 1
            n_pad = num_n * tn
        half = num_n // 2

    x = _prep_cloud(xyz1, n_pad, valid1, is_query=True)     # (B, n_pad, 8)
    y = _prep_cloud(xyz2, m_pad, valid2, is_query=False)    # (B, m_pad, 8)
    yt = jnp.transpose(y, (0, 2, 1))                         # (B, 8, m_pad) lane-dense RHS

    if core_split:
        grid = (2, half, num_m)
        x_spec = pl.BlockSpec((1, tn, 8), lambda c, ni, mi: (0, c * half + ni, 0))
        yt_spec = pl.BlockSpec((1, 8, tm), lambda c, ni, mi: (0, 0, mi))
        d1_shape = jax.ShapeDtypeStruct((1, 1, n_pad), jnp.float32)
        d1_spec = pl.BlockSpec((1, 1, tn), lambda c, ni, mi: (0, 0, c * half + ni))
        d2_shape = jax.ShapeDtypeStruct((2, num_m, tm), jnp.float32)
        d2_spec = pl.BlockSpec((1, num_m, tm), lambda c, ni, mi: (c, 0, 0))
    else:
        grid = (B, num_n, num_m)
        x_spec = pl.BlockSpec((1, tn, 8), lambda b, ni, mi: (b, ni, 0))
        yt_spec = pl.BlockSpec((1, 8, tm), lambda b, ni, mi: (b, 0, mi))
        d1_shape = jax.ShapeDtypeStruct((B, 1, n_pad), jnp.float32)
        d1_spec = pl.BlockSpec((1, 1, tn), lambda b, ni, mi: (b, 0, ni))
        d2_shape = jax.ShapeDtypeStruct((B, num_m, tm), jnp.float32)
        d2_spec = pl.BlockSpec((1, num_m, tm), lambda b, ni, mi: (b, 0, 0))

    cost = pl.CostEstimate(
        flops=2 * B * n_pad * m_pad * 8,
        transcendentals=B * (n_pad + m_pad),
        bytes_accessed=4 * (B * n_pad * 8 + B * 8 * m_pad * num_n + B * n_pad + B * m_pad),
    )

    d1, d2 = pl.pallas_call(
        _make_kernel(chunk),
        out_shape=(d1_shape, d2_shape),
        grid=grid,
        in_specs=[x_spec, yt_spec],
        out_specs=(d1_spec, d2_spec),
        scratch_shapes=[pltpu.VMEM((tn, 128), jnp.float32)],
        compiler_params=pltpu.CompilerParams(
            dimension_semantics=("parallel", "arbitrary", "arbitrary"),
            vmem_limit_bytes=32 * 1024 * 1024,     # v7x-safe (64 MiB physical)
        ),
        cost_estimate=cost,
    )(x, yt)

    d1 = d1[:, 0, :N]                               # (B, N) L2 distances (sqrt'd in kernel)
    if core_split:
        d2 = jnp.min(d2, axis=0).reshape(1, m_pad)[:, :M]   # combine per-core partials
    else:
        d2 = d2.reshape(B, m_pad)[:, :M]            # (B, M)

    if valid1 is None:
        return (jnp.mean(d1) + jnp.mean(d2)) / 2.0
    w1 = valid1.astype(jnp.float32)
    w2 = valid2.astype(jnp.float32)
    mean1 = jnp.sum(d1 * w1) / jnp.maximum(jnp.sum(w1), 1.0)
    mean2 = jnp.sum(d2 * w2) / jnp.maximum(jnp.sum(w2), 1.0)
    return (mean1 + mean2) / 2.0


def _reference(xyz1, xyz2):
    # Pure-JAX reference: mirrors chamfer_cuda forward + module post-processing.
    diff = xyz1[:, :, None, :] - xyz2[:, None, :, :]          # (B, N, M, 3)
    sq = jnp.sum(diff * diff, axis=-1)                        # (B, N, M)
    d1 = jnp.sqrt(jnp.min(sq, axis=2))                        # (B, N)
    d2 = jnp.sqrt(jnp.min(sq, axis=1))                        # (B, M)
    return (jnp.mean(d1) + jnp.mean(d2)) / 2.0


if __name__ == "__main__":
    key = jax.random.PRNGKey(0)
    ks = jax.random.split(key, 8)

    # 1) Small case: single tile per axis, B > 1 (batch-parallel path).
    xyz1 = jax.random.normal(ks[0], (2, 16, 3), dtype=jnp.float32)
    xyz2 = jax.random.normal(ks[1], (2, 8, 3), dtype=jnp.float32)
    out = jax.block_until_ready(chamfer_distance_l1(xyz1, xyz2))
    ref = _reference(xyz1, xyz2)
    assert jnp.allclose(out, ref, rtol=1e-5, atol=1e-5), (out, ref)

    # 2) Non-multiple sizes, one big tile per axis (N=300 -> 304, M=2200 -> 2304).
    xyz1b = jax.random.normal(ks[2], (1, 300, 3), dtype=jnp.float32)
    xyz2b = jax.random.normal(ks[3], (1, 2200, 3), dtype=jnp.float32)
    out2 = jax.block_until_ready(chamfer_distance_l1(xyz1b, xyz2b))
    ref2 = _reference(xyz1b, xyz2b)
    assert jnp.allclose(out2, ref2, rtol=1e-4, atol=1e-4), (out2, ref2)

    # 3) Multi-tile both axes + B==1 core-split path (2-way N split with
    #    per-core dist2 partials min-combined in the wrapper).
    xyz1c = jax.random.normal(ks[4], (1, 600, 3), dtype=jnp.float32)
    xyz2c = jax.random.normal(ks[5], (1, 4500, 3), dtype=jnp.float32)
    out3 = jax.block_until_ready(chamfer_distance_l1(xyz1c, xyz2c))
    ref3 = _reference(xyz1c, xyz2c)
    assert jnp.allclose(out3, ref3, rtol=1e-3, atol=1e-4), (out3, ref3)

    # 4) ignore_zeros path (batch_size == 1): all-zero rows are dropped.
    xyz1d = jax.random.normal(ks[6], (1, 24, 3), dtype=jnp.float32)
    xyz2d = jax.random.normal(ks[7], (1, 20, 3), dtype=jnp.float32)
    xyz1d = xyz1d.at[:, 3:8, :].set(0.0)
    xyz2d = xyz2d.at[:, 0:5, :].set(0.0)
    out4 = jax.block_until_ready(chamfer_distance_l1(xyz1d, xyz2d, ignore_zeros=True))
    m1 = jnp.sum(xyz1d[0], axis=1) != 0
    m2 = jnp.sum(xyz2d[0], axis=1) != 0
    ref4 = _reference(xyz1d[0][m1][None], xyz2d[0][m2][None])
    assert jnp.allclose(out4, ref4, rtol=1e-5, atol=1e-5), (out4, ref4)

    print("KERNEL_OK")
</pallas_src>

<mosaic_0001>
module attributes {stable_mosaic.version = 11 : i64} {
  func.func @kernel(%arg0: i32, %arg1: i32, %arg2: i32, %arg3: memref<1x16x8xf32, #tpu.memory_space<vmem>>, %arg4: memref<1x8x128xf32, #tpu.memory_space<vmem>>, %arg5: memref<1x1x16xf32, #tpu.memory_space<vmem>>, %arg6: memref<1x1x128xf32, #tpu.memory_space<vmem>>, %arg7: memref<16x128xf32, #tpu.memory_space<vmem>>) attributes {dimension_semantics = [#tpu.dimension_semantics<parallel>, #tpu.dimension_semantics<arbitrary>, #tpu.dimension_semantics<arbitrary>], iteration_bounds = array<i64: 2, 1, 1>, scalar_prefetch = 0 : i64, scratch_operands = 1 : i64, tpu.core_type = #tpu.core_type<tc>, window_params = [{transform_indices = @transform_0, window_bounds = array<i64: 1, 16, 8>}, {transform_indices = @transform_1, window_bounds = array<i64: 1, 8, 128>}, {transform_indices = @transform_2, window_bounds = array<i64: 1, 1, 16>}, {transform_indices = @transform_3, window_bounds = array<i64: 1, 1, 128>}]} {
    %c0 = arith.constant 0 : index
    %c0_0 = arith.constant 0 : index
    %c0_1 = arith.constant 0 : index
    %0 = vector.load %arg3[%c0, %c0_0, %c0_1] : memref<1x16x8xf32, #tpu.memory_space<vmem>>, vector<1x16x8xf32>
    %1 = vector.shape_cast %0 : vector<1x16x8xf32> to vector<16x8xf32>
    %c0_2 = arith.constant 0 : index
    %c0_3 = arith.constant 0 : index
    %c0_4 = arith.constant 0 : index
    %2 = vector.load %arg4[%c0_2, %c0_3, %c0_4] : memref<1x8x128xf32, #tpu.memory_space<vmem>>, vector<1x8x128xf32>
    %3 = vector.shape_cast %2 : vector<1x8x128xf32> to vector<8x128xf32>
    %c0_i32 = arith.constant 0 : i32
    %4 = arith.cmpi eq, %arg2, %c0_i32 : i32
    %5 = arith.extui %4 : i1 to i32
    %c0_i32_5 = arith.constant 0 : i32
    %6 = arith.cmpi ne, %5, %c0_i32_5 : i32
    scf.if %6 {
      %cst_19 = arith.constant 3.000000e+38 : f32
      %25 = vector.broadcast %cst_19 : f32 to vector<16x128xf32>
      %c0_20 = arith.constant 0 : index
      %c0_21 = arith.constant 0 : index
      %26 = vector.load %arg7[%c0_20, %c0_21] : memref<16x128xf32, #tpu.memory_space<vmem>>, vector<16x128xf32>
      tpu.vector_store %arg7[%c0_20, %c0_21], %25 {strides = array<i32>} : memref<16x128xf32, #tpu.memory_space<vmem>>, vector<16x128xf32>,
    } else {
    }
    %cst = arith.constant dense<0.000000e+00> : vector<16x128xf32>
    %7 = tpu.matmul %1, %3, %cst {dimension_numbers = #tpu.dot_dimension_numbers<[1], [0], [0], [1], [0, 0, 1, 1], [], []>} : vector<16x8xf32>, vector<8x128xf32>, vector<16x128xf32> -> vector<16x128xf32>
    %c0_6 = arith.constant 0 : index
    %c0_7 = arith.constant 0 : index
    %8 = vector.load %arg7[%c0_6, %c0_7] : memref<16x128xf32, #tpu.memory_space<vmem>>, vector<16x128xf32>
    %9 = arith.minimumf %8, %7 : vector<16x128xf32>
    %c0_8 = arith.constant 0 : index
    %c0_9 = arith.constant 0 : index
    %10 = vector.load %arg7[%c0_8, %c0_9] : memref<16x128xf32, #tpu.memory_space<vmem>>, vector<16x128xf32>
    tpu.vector_store %arg7[%c0_8, %c0_9], %9 {strides = array<i32>} : memref<16x128xf32, #tpu.memory_space<vmem>>, vector<16x128xf32>,
    %cst_10 = arith.constant dense<0x7F800000> : vector<128xf32>
    %11 = vector.multi_reduction <minimumf>, %7, %cst_10 [0] : vector<16x128xf32> to vector<128xf32>
    %12 = vector.shape_cast %11 : vector<128xf32> to vector<1x128xf32>
    %c0_i32_11 = arith.constant 0 : i32
    %13 = arith.cmpi eq, %arg1, %c0_i32_11 : i32
    %14 = arith.extui %13 : i1 to i32
    %c0_i32_12 = arith.constant 0 : i32
    %15 = arith.cmpi ne, %14, %c0_i32_12 : i32
    scf.if %15 {
      %c0_19 = arith.constant 0 : index
      %25 = arith.index_cast %arg2 : i32 to index
      %c0_20 = arith.constant 0 : index
      %26 = vector.load %arg6[%c0_19, %25, %c0_20] : memref<1x1x128xf32, #tpu.memory_space<vmem>>, vector<1x1x128xf32>
      %27 = vector.shape_cast %26 : vector<1x1x128xf32> to vector<1x128xf32>
      %28 = vector.shape_cast %12 : vector<1x128xf32> to vector<1x1x128xf32>
      tpu.vector_store %arg6[%c0_19, %25, %c0_20], %28 {strides = array<i32>} : memref<1x1x128xf32, #tpu.memory_space<vmem>>, vector<1x1x128xf32>,
    } else {
    }
    %c0_i32_13 = arith.constant 0 : i32
    %16 = arith.cmpi sgt, %arg1, %c0_i32_13 : i32
    %17 = arith.extui %16 : i1 to i32
    %c0_i32_14 = arith.constant 0 : i32
    %18 = arith.cmpi ne, %17, %c0_i32_14 : i32
    scf.if %18 {
      %c0_19 = arith.constant 0 : index
      %25 = arith.index_cast %arg2 : i32 to index
      %c0_20 = arith.constant 0 : index
      %26 = vector.load %arg6[%c0_19, %25, %c0_20] : memref<1x1x128xf32, #tpu.memory_space<vmem>>, vector<1x1x128xf32>
      %27 = vector.shape_cast %26 : vector<1x1x128xf32> to vector<1x128xf32>
      %28 = arith.minimumf %27, %12 : vector<1x128xf32>
      %c0_21 = arith.constant 0 : index
      %29 = arith.index_cast %arg2 : i32 to index
      %c0_22 = arith.constant 0 : index
      %30 = vector.load %arg6[%c0_21, %29, %c0_22] : memref<1x1x128xf32, #tpu.memory_space<vmem>>, vector<1x1x128xf32>
      %31 = vector.shape_cast %30 : vector<1x1x128xf32> to vector<1x128xf32>
      %32 = vector.shape_cast %28 : vector<1x128xf32> to vector<1x1x128xf32>
      tpu.vector_store %arg6[%c0_21, %29, %c0_22], %32 {strides = array<i32>} : memref<1x1x128xf32, #tpu.memory_space<vmem>>, vector<1x1x128xf32>,
    } else {
    }
    %c0_i32_15 = arith.constant 0 : i32
    %19 = arith.cmpi eq, %arg1, %c0_i32_15 : i32
    %20 = arith.extui %19 : i1 to i32
    %c0_i32_16 = arith.constant 0 : i32
    %21 = arith.cmpi ne, %20, %c0_i32_16 : i32
    scf.if %21 {
      %c0_19 = arith.constant 0 : index
      %25 = arith.index_cast %arg2 : i32 to index
      %c0_20 = arith.constant 0 : index
      %26 = vector.load %arg6[%c0_19, %25, %c0_20] : memref<1x1x128xf32, #tpu.memory_space<vmem>>, vector<1x1x128xf32>
      %27 = vector.shape_cast %26 : vector<1x1x128xf32> to vector<1x128xf32>
      %cst_21 = arith.constant 0.000000e+00 : f32
      %28 = vector.broadcast %cst_21 : f32 to vector<1x128xf32>
      %29 = arith.maximumf %27, %28 : vector<1x128xf32>
      %30 = math.sqrt %29 : vector<1x128xf32>
      %c0_22 = arith.constant 0 : index
      %31 = arith.index_cast %arg2 : i32 to index
      %c0_23 = arith.constant 0 : index
      %32 = vector.load %arg6[%c0_22, %31, %c0_23] : memref<1x1x128xf32, #tpu.memory_space<vmem>>, vector<1x1x128xf32>
      %33 = vector.shape_cast %32 : vector<1x1x128xf32> to vector<1x128xf32>
      %34 = vector.shape_cast %30 : vector<1x128xf32> to vector<1x1x128xf32>
      tpu.vector_store %arg6[%c0_22, %31, %c0_23], %34 {strides = array<i32>} : memref<1x1x128xf32, #tpu.memory_space<vmem>>, vector<1x1x128xf32>,
    } else {
    }
    %c0_i32_17 = arith.constant 0 : i32
    %22 = arith.cmpi eq, %arg2, %c0_i32_17 : i32
    %23 = arith.extui %22 : i1 to i32
    %c0_i32_18 = arith.constant 0 : i32
    %24 = arith.cmpi ne, %23, %c0_i32_18 : i32
    scf.if %24 {
      %c0_19 = arith.constant 0 : index
      %c0_20 = arith.constant 0 : index
      %25 = vector.load %arg7[%c0_19, %c0_20] : memref<16x128xf32, #tpu.memory_space<vmem>>, vector<16x128xf32>
      %cst_21 = arith.constant dense<0x7F800000> : vector<16xf32>
      %26 = vector.multi_reduction <minimumf>, %25, %cst_21 [1] : vector<16x128xf32> to vector<16xf32>
      %cst_22 = arith.constant 0.000000e+00 : f32
      %27 = vector.broadcast %cst_22 : f32 to vector<16xf32>
      %28 = arith.maximumf %26, %27 : vector<16xf32>
      %29 = math.sqrt %28 : vector<16xf32>
      %c0_23 = arith.constant 0 : index
      %c0_24 = arith.constant 0 : index
      %c0_25 = arith.constant 0 : index
      %30 = vector.load %arg5[%c0_23, %c0_24, %c0_25] : memref<1x1x16xf32, #tpu.memory_space<vmem>>, vector<1x1x16xf32>
      %31 = vector.shape_cast %30 : vector<1x1x16xf32> to vector<16xf32>
      %32 = vector.shape_cast %29 : vector<16xf32> to vector<1x1x16xf32>
      tpu.vector_store %arg5[%c0_23, %c0_24, %c0_25], %32 {strides = array<i32>} : memref<1x1x16xf32, #tpu.memory_space<vmem>>, vector<1x1x16xf32>,
    } else {
    }
    return
  }
  func.func @transform_0(%arg0: i32, %arg1: i32, %arg2: i32) -> (i32, i32, i32) {
    %c0_i32 = arith.constant 0 : i32
    %c0_i32_0 = arith.constant 0 : i32
    return %arg0, %arg1, %c0_i32 : i32, i32, i32
  }
  func.func @transform_1(%arg0: i32, %arg1: i32, %arg2: i32) -> (i32, i32, i32) {
    %c0_i32 = arith.constant 0 : i32
    %c0_i32_0 = arith.constant 0 : i32
    return %arg0, %c0_i32, %arg2 : i32, i32, i32
  }
  func.func @transform_2(%arg0: i32, %arg1: i32, %arg2: i32) -> (i32, i32, i32) {
    %c0_i32 = arith.constant 0 : i32
    %c0_i32_0 = arith.constant 0 : i32
    return %arg0, %c0_i32, %arg1 : i32, i32, i32
  }
  func.func @transform_3(%arg0: i32, %arg1: i32, %arg2: i32) -> (i32, i32, i32) {
    %c0_i32 = arith.constant 0 : i32
    %c0_i32_0 = arith.constant 0 : i32
    %c0_i32_1 = arith.constant 0 : i32
    return %arg0, %c0_i32, %c0_i32_0 : i32, i32, i32
  }
}

</mosaic_0001>

<llo_original>
// kernel: chamfer_distance_l1.1
$region0: #{chamfer_distance_l1.1}
  #allocation0 [shape = 'u32[]', space=smem, size = 0x4, offset = 0x4, fixed_abs, tag = 'smem constant byte address 0x4 - core index']
  #allocation1 [shape = 'u32[144,128]{1,0:T(1,128)}', space=vmem, size = 0x12000, scoped, tag = 'internal scratch']
  #allocation2 [shape = 'f32[16,128]{1,0:T(8,128)}', space=vmem, size = 0x2000, scoped, tag = 'scratch operand']
  %s0 = inlined_call_operand.vmem [shape: f32[2,16,8], index: 0, kind: input, shape index: {}]
  %s1 = inlined_call_operand.vmem [shape: f32[2,8,128], index: 1, kind: input, shape index: {}]
  %s2 = inlined_call_operand.vmem [shape: f32[2,1,16], index: 2, kind: output, shape index: {0}]
  %s3 = inlined_call_operand.vmem [shape: f32[2,1,128], index: 3, kind: output, shape index: {1}]
  %4 = xla_tuple %s2, %s3
  %s5 = sld [smem:[#allocation0]]
  $region69: #{chamfer_distance_l1.1} parent=0
    _
  %s7 = ssub.s32 1, %s5
  %s8 = scalar_select 0, %s7, %s5
  loop: start=0, step=1, limit=4
  $region2: #{chamfer_distance_l1.1} parent=0 // loop_pre_header
    _
  $region3: #{chamfer_distance_l1.1} parent=0 // loop_header
    %s10 = sphi 0, %s14
    %p11 = scmp.ge.s32.totalorder %s10, 4
    %s17 = sphi 0, %s36
    %s18 = sphi 0, %s32
    %s19 = sphi 0, %s28
    %s20 = sphi 0, %s17
    %s21 = sphi 0, %s18
    %s22 = sphi 0, %s19
    %s23 = sphi 0, %s20
    %s24 = sphi 0, %s21
    %s25 = sphi 0, %s22
    %s41 = sphi 0, %s43
    %s44 = sphi 0, %s41
    %s45 = sphi 0, %s44
    %s61 = sphi 0, %s45
    %s69 = sphi 0, %s71
    %s72 = sphi 0, %s69
    %s73 = sphi 0, %s72
    %s89 = sphi 0, %s73
    %s97 = sphi 0, %s99
    %s100 = sphi 0, %s97
    %s101 = sphi 0, %s100
    %s117 = sphi 0, %s101
    %s123 = sphi 0, %s125
    %s126 = sphi 0, %s123
    %s127 = sphi 0, %s126
    %s143 = sphi 0, %s127
  $region4: #{chamfer_distance_l1.1} parent=0 // loop_header_branch
    %13 = sbr.rel (%p11) target = $region8
  $region5: #{chamfer_distance_l1.1} parent=0 // loop_body
    %s15 = ssub.s32 %s10, 1
    %s16 = ssub.s32 %s10, 2
    %s26 = sadd.s32 1, %s19
    %p27 = scmp.ge.s32.totalorder %s26, 1
    %s28 = scalar_select %p27, 0, %s26
    %s29 = sadd.s32 1, %s18
    %s30 = scalar_select %p27, %s29, %s18
    %p31 = scmp.ge.s32.totalorder %s30, 1
    %s32 = scalar_select %p31, 0, %s30
    %s33 = sadd.s32 1, %s17
    %s34 = scalar_select %p31, %s33, %s17
    %p35 = scmp.ge.s32.totalorder %s34, 2
    %s36 = scalar_select %p35, 0, %s34
    %s37 = ssub.s32 %s17, %s36
    %s38 = ssub.s32 %s18, %s32
    %s39 = sor.u32 %s37, %s38
    %p40 = scmp.eq.s32.totalorder %s39, 0
    %s42 = sadd.s32 %s41, 1
    %s43 = scalar_select %p40, %s41, %s42
    %p46 = pneg %p40
    %p47 = scmp.eq.s32.totalorder %s10, 1
    %p48 = por %p46, %p47
    %p49 = scmp.ne.s32.totalorder %s41, %s44
    %p50 = scmp.eq.s32.totalorder %s10, 0
    %p51 = por %p49, %p50
    %p52 = scmp.ne.s32.totalorder %s41, %s44
    %p53 = scmp.eq.s32.totalorder %s15, 1
    %p54 = por %p52, %p53
    %p55 = scmp.ne.s32.totalorder %s44, %s45
    %p56 = scmp.eq.s32.totalorder %s15, 0
    %p57 = por %p55, %p56
    %p58 = scmp.ne.s32.totalorder %s44, %s45
    %p59 = scmp.eq.s32.totalorder %s16, 1
    %p60 = por %p58, %p59
    %p62 = scmp.ne.s32.totalorder %s45, %s61
    %p63 = scmp.eq.s32.totalorder %s16, 0
    %p64 = por %p62, %p63
    %s65 = ssub.s32 %s17, %s36
    %s66 = ssub.s32 %s19, %s28
    %s67 = sor.u32 %s65, %s66
    %p68 = scmp.eq.s32.totalorder %s67, 0
    %s70 = sadd.s32 %s69, 1
    %s71 = scalar_select %p68, %s69, %s70
    %p74 = pneg %p68
    %p75 = scmp.eq.s32.totalorder %s10, 1
    %p76 = por %p74, %p75
    %p77 = scmp.ne.s32.totalorder %s69, %s72
    %p78 = scmp.eq.s32.totalorder %s10, 0
    %p79 = por %p77, %p78
    %p80 = scmp.ne.s32.totalorder %s69, %s72
    %p81 = scmp.eq.s32.totalorder %s15, 1
    %p82 = por %p80, %p81
    %p83 = scmp.ne.s32.totalorder %s72, %s73
    %p84 = scmp.eq.s32.totalorder %s15, 0
    %p85 = por %p83, %p84
    %p86 = scmp.ne.s32.totalorder %s72, %s73
    %p87 = scmp.eq.s32.totalorder %s16, 1
    %p88 = por %p86, %p87
    %p90 = scmp.ne.s32.totalorder %s73, %s89
    %p91 = scmp.eq.s32.totalorder %s16, 0
    %p92 = por %p90, %p91
    %s93 = ssub.s32 %s17, %s36
    %s94 = ssub.s32 %s18, %s32
    %s95 = sor.u32 %s93, %s94
    %p96 = scmp.eq.s32.totalorder %s95, 0
    %s98 = sadd.s32 %s97, 1
    %s99 = scalar_select %p96, %s97, %s98
    %p102 = pneg %p96
    %p103 = scmp.eq.s32.totalorder %s10, 1
    %p104 = por %p102, %p103
    %p105 = scmp.ne.s32.totalorder %s97, %s100
    %p106 = scmp.eq.s32.totalorder %s10, 0
    %p107 = por %p105, %p106
    %p108 = scmp.ne.s32.totalorder %s97, %s100
    %p109 = scmp.eq.s32.totalorder %s15, 1
    %p110 = por %p108, %p109
    %p111 = scmp.ne.s32.totalorder %s100, %s101
    %p112 = scmp.eq.s32.totalorder %s15, 0
    %p113 = por %p111, %p112
    %p114 = scmp.ne.s32.totalorder %s100, %s101
    %p115 = scmp.eq.s32.totalorder %s16, 1
    %p116 = por %p114, %p115
    %p118 = scmp.ne.s32.totalorder %s101, %s117
    %p119 = scmp.eq.s32.totalorder %s16, 0
    %p120 = por %p118, %p119
    %s121 = ssub.s32 %s17, %s36
    %p122 = scmp.eq.s32.totalorder %s121, 0
    %s124 = sadd.s32 %s123, 1
    %s125 = scalar_select %p122, %s123, %s124
    %p128 = pneg %p122
    %p129 = scmp.eq.s32.totalorder %s10, 1
    %p130 = por %p128, %p129
    %p131 = scmp.ne.s32.totalorder %s123, %s126
    %p132 = scmp.eq.s32.totalorder %s10, 0
    %p133 = por %p131, %p132
    %p134 = scmp.ne.s32.totalorder %s123, %s126
    %p135 = scmp.eq.s32.totalorder %s15, 1
    %p136 = por %p134, %p135
    %p137 = scmp.ne.s32.totalorder %s126, %s127
    %p138 = scmp.eq.s32.totalorder %s15, 0
    %p139 = por %p137, %p138
    %p140 = scmp.ne.s32.totalorder %s126, %s127
    %p141 = scmp.eq.s32.totalorder %s16, 1
    %p142 = por %p140, %p141
    %p144 = scmp.ne.s32.totalorder %s127, %s143
    %p145 = scmp.eq.s32.totalorder %s16, 0
    %p146 = por %p144, %p145
    %p147 = scmp.le.s32.totalorder 1, %s10
    %p148 = scmp.lt.s32.totalorder %s10, 3
    %p149 = pnand %p147, %p148
    %p150 = pneg %p149
    // Predicated region
    $region9: #{chamfer_distance_l1.1} parent=5 // pred_check
      _
    $region10: #{chamfer_distance_l1.1} parent=5 // pred_check_branch
      %152 = sbr.rel (%p149) target = $region12
    $region11: #{chamfer_distance_l1.1} parent=5 // pred_region
      %s153 = ssub.s32 %s10, 1
    $region12: #{chamfer_distance_l1.1} parent=5 // pred_fallthru
      _
    %p154 = scmp.lt.s32.totalorder %s10, 2
    // Predicated region
    $region13: #{chamfer_distance_l1.1} parent=5 // pred_check
      %p155 = pneg %p154
    $region14: #{chamfer_distance_l1.1} parent=5 // pred_check_branch
      %157 = sbr.rel (%p155) target = $region16
    $region15: #{chamfer_distance_l1.1} parent=5 // pred_region
      // Predicated region
      $region17: #{chamfer_distance_l1.1} parent=15 // pred_check
        %p158 = pneg %p51
      $region18: #{chamfer_distance_l1.1} parent=15 // pred_check_branch
        %160 = sbr.rel (%p158) target = $region20
      $region19: #{chamfer_distance_l1.1} parent=15 // pred_region
        %s161 = smul.u32 2, %s18
        %p162 = scmp.lt.s32.totalorder %s17, 1
        %s163 = scalar_select %p162, %s17, 1
        %p164 = scmp.lt.s32.totalorder %s161, 1
        %s165 = scalar_select %p164, %s161, 1
        %s166 = smul.addr %s163, 2
        %s167 = sadd.s32 %s165, %s166
        %s168 = smul.addr %s167, 8
        %s169 = scalar_lea.vmem %s0, %s168
        %s170 = smul.u32 2, %s18
      $region20: #{chamfer_distance_l1.1} parent=15 // pred_fallthru
        _
      // Predicated region
      $region21: #{chamfer_distance_l1.1} parent=15 // pred_check
        %p171 = pneg %p79
      $region22: #{chamfer_distance_l1.1} parent=15 // pred_check_branch
        %173 = sbr.rel (%p171) target = $region24
      $region23: #{chamfer_distance_l1.1} parent=15 // pred_region
        %p174 = scmp.lt.s32.totalorder %s17, 1
        %s175 = scalar_select %p174, %s17, 1
        %p176 = scmp.lt.s32.totalorder %s19, 0
        %s177 = scalar_select %p176, %s19, 0
        %s178 = sadd.s32 %s177, %s175
        %s179 = smul.addr %s178, 8
        %s180 = scalar_lea.vmem %s1, %s179
      $region24: #{chamfer_distance_l1.1} parent=15 // pred_fallthru
        _
    $region16: #{chamfer_distance_l1.1} parent=5 // pred_fallthru
      _
    %p181 = scmp.le.s32.totalorder 1, %s10
    %p182 = scmp.lt.s32.totalorder %s10, 3
    %p183 = pnand %p181, %p182
    %p184 = pneg %p183
    // Predicated region
    $region25: #{chamfer_distance_l1.1} parent=5 // pred_check
      _
    $region26: #{chamfer_distance_l1.1} parent=5 // pred_check_branch
      %186 = sbr.rel (%p183) target = $region28
    $region27: #{chamfer_distance_l1.1} parent=5 // pred_region
      %s187 = ssub.s32 %s10, 1
      %s188 = smul.u32 2, %s21
      %p189 = scmp.lt.s32.totalorder %s20, 1
      %s190 = scalar_select %p189, %s20, 1
      %p191 = scmp.lt.s32.totalorder %s188, 1
      %s192 = scalar_select %p191, %s188, 1
      %s193 = smul.addr %s190, 2
      %s194 = sadd.s32 %s192, %s193
      %s195 = smul.addr %s194, 8
      %s196 = scalar_lea.vmem %s0, %s195
      %p197 = pneg %p57
      %p198 = pneg %p54
      %p199 = scmp.lt.s32.totalorder %s20, 1
      %s200 = scalar_select %p199, %s20, 1
      %p201 = scmp.lt.s32.totalorder %s22, 0
      %s202 = scalar_select %p201, %s22, 0
      %s203 = sadd.s32 %s202, %s200
      %s204 = smul.addr %s203, 8
      %s205 = scalar_lea.vmem %s1, %s204
      %p206 = pneg %p85
      %p207 = pneg %p82
      %p208 = pneg %p113
      %p209 = pneg %p110
      %p210 = scmp.lt.s32.totalorder %s20, 1
      %s211 = scalar_select %p210, %s20, 1
      %p212 = scmp.lt.s32.totalorder %s21, 0
      %s213 = scalar_select %p212, %s21, 0
      %s214 = sadd.s32 %s213, %s211
      %s215 = scalar_lea.vmem %s2, %s214
      %p216 = pneg %p139
      %p217 = pneg %p136
      %p218 = scmp.lt.s32.totalorder %s20, 1
      %s219 = scalar_select %p218, %s20, 1
      %s220 = scalar_lea.vmem %s3, %s219
      %s221 = smul.u32 2, %s21
      %p222 = scmp.lt.s32.totalorder %s20, 1
      %s223 = scalar_select %p222, %s20, 1
      %p224 = scmp.lt.s32.totalorder %s221, 1
      %s225 = scalar_select %p224, %s221, 1
      %s226 = smul.addr %s223, 2
      %s227 = sadd.s32 %s225, %s226
      %s228 = smul.addr %s227, 8
      %s229 = scalar_lea.vmem %s0, %s228
      %s230 = smul.u32 2, %s21
      %p231 = scmp.lt.s32.totalorder %s20, 1
      %s232 = scalar_select %p231, %s20, 1
      %p233 = scmp.lt.s32.totalorder %s22, 0
      %s234 = scalar_select %p233, %s22, 0
      %s235 = sadd.s32 %s234, %s232
      %s236 = smul.addr %s235, 8
      %s237 = scalar_lea.vmem %s1, %s236
      %p238 = scmp.lt.s32.totalorder %s20, 1
      %s239 = scalar_select %p238, %s20, 1
      %p240 = scmp.lt.s32.totalorder %s21, 0
      %s241 = scalar_select %p240, %s21, 0
      %s242 = sadd.s32 %s241, %s239
      %s243 = scalar_lea.vmem %s2, %s242
      %p244 = scmp.lt.s32.totalorder %s20, 1
      %s245 = scalar_select %p244, %s20, 1
      %s246 = scalar_lea.vmem %s3, %s245
      %v247 = vld [vmem:[%s229] sm:$0xff]
      %v248 = vld [vmem:[%s229 + $0x8] sm:$0xff]
      %v249 = vld [vmem:[%s237] sm:$0xff]
      %p250 = scmp.eq.s32.totalorder %s22, 0
      // Predicated region
      $region29: #{chamfer_distance_l1.1} parent=27 // pred_check
        %p251 = pneg %p250
      $region30: #{chamfer_distance_l1.1} parent=27 // pred_check_branch
        %253 = sbr.rel (%p251) target = $region32
      $region31: #{chamfer_distance_l1.1} parent=27 // pred_region
        %254 = vst [vmem:[#allocation2] sm:$0xff] 3e+38
        %255 = vst [vmem:[#allocation2 + $0x8] sm:$0xff] 3e+38
      $region32: #{chamfer_distance_l1.1} parent=27 // pred_fallthru
        _
      %vm256 = vcmask 64512
      %v258 = vsel %vm256, %v247, 0
      %v261 = vsel %vm256, %v248, 0
      %263 = vmatprep.subr.mxu0 0.0
      %264 = vmatpush1.msra.mxu0 %v249
      %265 = vmatprep.subr.mxu0 0.0
      %266 = vmatpush1.msra.mxu0 0.0
      %267 = vmatprep.subr.mxu0 0.0
      %268 = vmatpush1.msra.mxu0 0.0
      %269 = vmatprep.subr.mxu0 0.0
      %270 = vmatpush1.msra.mxu0 0.0
      %271 = vmatprep.subr.mxu0 0.0
      %272 = vmatpush1.msra.mxu0 0.0
      %273 = vmatprep.subr.mxu0 0.0
      %274 = vmatpush1.msra.mxu0 0.0
      %275 = vmatprep.subr.mxu0 0.0
      %276 = vmatpush1.msra.mxu0 0.0
      %277 = vmatprep.subr.mxu0 0.0
      %278 = vmatpush1.msra.mxu0 0.0
      %279 = vmatprep.subr.mxu0 0.0
      %280 = vmatpush1.msra.mxu0 0.0
      %281 = vmatprep.subr.mxu0 0.0
      %282 = vmatpush1.msra.mxu0 0.0
      %283 = vmatprep.subr.mxu0 0.0
      %284 = vmatpush1.msra.mxu0 0.0
      %285 = vmatprep.subr.mxu0 0.0
      %286 = vmatpush1.msra.mxu0 0.0
      %287 = vmatprep.subr.mxu0 0.0
      %288 = vmatpush1.msra.mxu0 0.0
      %289 = vmatprep.subr.mxu0 0.0
      %290 = vmatpush1.msra.mxu0 0.0
      %291 = vmatprep.subr.mxu0 0.0
      %292 = vmatpush1.msra.mxu0 0.0
      %293 = vmatprep.subr.mxu0 0.0
      %294 = vmatpush1.msra.mxu0 0.0
      %295 = vmatprep.subr.mxu0 0.0
      %296 = vmatpush1.msra.mxu0 0.0
      %297 = vmatprep.subr.mxu0 0.0
      %298 = vmatpush1.msra.mxu0 0.0
      %299 = vmatprep.subr.mxu0 0.0
      %300 = vmatpush1.msra.mxu0 0.0
      %301 = vmatprep.subr.mxu0 0.0
      %302 = vmatpush1.msra.mxu0 0.0
      %303 = vmatprep.subr.mxu0 0.0
      %304 = vmatpush1.msra.mxu0 0.0
      %305 = vmatprep.subr.mxu0 0.0
      %306 = vmatpush1.msra.mxu0 0.0
      %307 = vmatprep.subr.mxu0 0.0
      %308 = vmatpush1.msra.mxu0 0.0
      %309 = vmatprep.subr.mxu0 0.0
      %310 = vmatpush1.msra.mxu0 0.0
      %311 = vmatprep.subr.mxu0 0.0
      %312 = vmatpush1.msra.mxu0 0.0
      %313 = vmatprep.subr.mxu0 0.0
      %314 = vmatpush1.msra.mxu0 0.0
      %315 = vmatprep.subr.mxu0 0.0
      %316 = vmatpush1.msra.mxu0 0.0
      %317 = vmatprep.subr.mxu0 0.0
      %318 = vmatpush1.msra.mxu0 0.0
      %319 = vmatprep.subr.mxu0 0.0
      %320 = vmatpush1.msra.mxu0 0.0
      %321 = vmatprep.subr.mxu0 0.0
      %322 = vmatpush1.msra.mxu0 0.0
      %323 = vmatprep.subr.mxu0 0.0
      %324 = vmatpush1.msra.mxu0 0.0
      %325 = vmatprep.subr.mxu0 0.0
      %326 = vmatpush1.msra.mxu0 0.0
      %327 = vmatprep.mubr.f32.mxu0 0.0
      %328 = vmatmul.mubr.f32.gmra.mrb[0].mxu0 %v258
      %v329 = vpop.f32.mrb[0].mxu0
      %v330 = vadd.f32 0.0, %v329
      %v331 = vpop.f32.mrb[0].mxu0
      %332 = vmatprep.mubr.f32.mxu0 0.0
      %333 = vmatmul.mubr.f32.gmra.mrb[0].mxu0 %v261
      %v334 = vpop.f32.mrb[0].mxu0
      %v335 = vadd.f32 0.0, %v334
      %v336 = vpop.f32.mrb[0].mxu0
      %337 = vdwg.mxu0
      %v338 = vld [vmem:[#allocation2] sm:$0xff]
      %v339 = vld [vmem:[#allocation2 + $0x8] sm:$0xff]
      %v340 = vmin.f32 %v338, %v330
      %v341 = vmin.f32 %v339, %v335
      %342 = vst [vmem:[#allocation2] sm:$0xff] %v340
      %343 = vst [vmem:[#allocation2 + $0x8] sm:$0xff] %v341
      %v344 = vmin.f32 %v330, %v335
      %v345 = vrot.slane %v344, 4
      %v346 = vmin.f32 %v344, %v345
      %v347 = vrot.slane %v346, 2
      %v348 = vmin.f32 %v346, %v347
      %v349 = vrot.slane %v348, 1
      %v350 = vmin.f32 %v348, %v349
      %p351 = scmp.eq.s32.totalorder %s21, 0
      // Predicated region
      $region33: #{chamfer_distance_l1.1} parent=27 // pred_check
        %p352 = pneg %p351
      $region34: #{chamfer_distance_l1.1} parent=27 // pred_check_branch
        %354 = sbr.rel (%p352) target = $region36
      $region35: #{chamfer_distance_l1.1} parent=27 // pred_region
        %s355 = scalar_lea.vmem %s246, %s22
        %356 = vst [vmem:[%s355] sm:$0x1] %v350
      $region36: #{chamfer_distance_l1.1} parent=27 // pred_fallthru
        _
      %p357 = scmp.gt.s32.totalorder %s21, 0
      // Predicated region
      $region37: #{chamfer_distance_l1.1} parent=27 // pred_check
        %p358 = pneg %p357
      $region38: #{chamfer_distance_l1.1} parent=27 // pred_check_branch
        %360 = sbr.rel (%p358) target = $region40
      $region39: #{chamfer_distance_l1.1} parent=27 // pred_region
        %s361 = scalar_lea.vmem %s246, %s22
        %v362 = vld [vmem:[%s361] sm:$0x1]
        %v363 = vmin.f32 %v362, %v350
        %364 = vst [vmem:[%s361] sm:$0x1] %v363
      $region40: #{chamfer_distance_l1.1} parent=27 // pred_fallthru
        _
      // Predicated region
      $region41: #{chamfer_distance_l1.1} parent=27 // pred_check
        %p365 = pneg %p351
      $region42: #{chamfer_distance_l1.1} parent=27 // pred_check_branch
        %367 = sbr.rel (%p365) target = $region44
      $region43: #{chamfer_distance_l1.1} parent=27 // pred_region
        %s368 = scalar_lea.vmem %s246, %s22
        %v369 = vld [vmem:[%s368] sm:$0x1]
        %v370 = vmax.f32 %v369, 0.0
        %v371 = vrsqrt.pop %v370
        %v372 = vmul.f32 %v370, %v371
        %vm373 = vcmp.eq.f32.partialorder %v370, inf
        %v374 = vsel %vm373, %v370, %v372
        %vm375 = vcmp.eq.f32.partialorder %v370, 0.0
        %v376 = vand.u32 %v370, 2147483648
        %v377 = vsel %vm375, %v376, %v374
        %378 = vst [vmem:[%s368] sm:$0x1] %v377
      $region44: #{chamfer_distance_l1.1} parent=27 // pred_fallthru
        _
      // Predicated region
      $region45: #{chamfer_distance_l1.1} parent=27 // pred_check
        %p379 = pneg %p250
      $region46: #{chamfer_distance_l1.1} parent=27 // pred_check_branch
        %381 = sbr.rel (%p379) target = $region48
      $region47: #{chamfer_distance_l1.1} parent=27 // pred_region
        %v382 = vld [vmem:[#allocation2] sm:$0xff]
        %v383 = vld [vmem:[#allocation2 + $0x8] sm:$0xff]
        %384 = vmin.xlane.f32.xlu0 %v382
        %v385 = vpop.xlane.xlu0 %384
        %386 = vmin.xlane.f32.xlu0 %v383
        %v387 = vpop.xlane.xlu0 %386
        %v388 = vmax.f32 %v385, 0.0
        %v389 = vmax.f32 %v387, 0.0
        %v390 = vrsqrt.pop %v388
        %v391 = vmul.f32 %v388, %v390
        %vm392 = vcmp.eq.f32.partialorder %v388, inf
        %v393 = vsel %vm392, %v388, %v391
        %vm394 = vcmp.eq.f32.partialorder %v388, 0.0
        %v395 = vand.u32 %v388, 2147483648
        %v396 = vsel %vm394, %v395, %v393
        %v397 = vrsqrt.pop %v389
        %v398 = vmul.f32 %v389, %v397
        %vm399 = vcmp.eq.f32.partialorder %v389, inf
        %v400 = vsel %vm399, %v389, %v398
        %vm401 = vcmp.eq.f32.partialorder %v389, 0.0
        %v402 = vand.u32 %v389, 2147483648
        %v403 = vsel %vm401, %v402, %v400
        %v406 = vlaneseq
        %v407 = vand.u32 %v406, 127
        %v408 = vlaneseq
        %v409 = vshrl.u32 %v408, 7
        %v410 = vsub.s32 %v407, %v409
        %v411 = vrot.slane %v396, %v410
        %v412 = vadd.s32 %v407, 4294967288
        %v413 = vlaneseq
        %v414 = vshrl.u32 %v413, 7
        %v415 = vsub.s32 %v412, %v414
        %v416 = vrot.slane %v403, %v415
        %vm417 = vcmask 130112
        %v418 = vsel %vm417, %v416, %v411
        %vm420 = vcmask 122880
        %421 = vst.msk [vmem:[%s243] sm:$0x1] %vm420, %v418
      $region48: #{chamfer_distance_l1.1} parent=27 // pred_fallthru
        _
      %p422 = scmp.lt.s32.totalorder %s20, 1
      %s423 = scalar_select %p422, %s20, 1
      %p424 = scmp.lt.s32.totalorder %s21, 0
      %s425 = scalar_select %p424, %s21, 0
      %s426 = sadd.s32 %s425, %s423
      %s427 = scalar_lea.vmem %s2, %s426
      %p428 = scmp.lt.s32.totalorder %s20, 1
      %s429 = scalar_select %p428, %s20, 1
      %s430 = scalar_lea.vmem %s3, %s429
      // Predicated region
      $region49: #{chamfer_distance_l1.1} parent=27 // pred_check
        %p431 = pneg %p110
      $region50: #{chamfer_distance_l1.1} parent=27 // pred_check_branch
        %433 = sbr.rel (%p431) target = $region52
      $region51: #{chamfer_distance_l1.1} parent=27 // pred_region
        _
      $region52: #{chamfer_distance_l1.1} parent=27 // pred_fallthru
        _
      // Predicated region
      $region53: #{chamfer_distance_l1.1} parent=27 // pred_check
        %p434 = pneg %p136
      $region54: #{chamfer_distance_l1.1} parent=27 // pred_check_branch
        %436 = sbr.rel (%p434) target = $region56
      $region55: #{chamfer_distance_l1.1} parent=27 // pred_region
        _
      $region56: #{chamfer_distance_l1.1} parent=27 // pred_fallthru
        _
    $region28: #{chamfer_distance_l1.1} parent=5 // pred_fallthru
      _
    %p437 = scmp.le.s32.totalorder 2, %s10
    // Predicated region
    $region57: #{chamfer_distance_l1.1} parent=5 // pred_check
      %p438 = pneg %p437
    $region58: #{chamfer_distance_l1.1} parent=5 // pred_check_branch
      %440 = sbr.rel (%p438) target = $region60
    $region59: #{chamfer_distance_l1.1} parent=5 // pred_region
      %s441 = ssub.s32 %s10, 2
      // Predicated region
      $region61: #{chamfer_distance_l1.1} parent=59 // pred_check
        %p442 = pneg %p116
      $region62: #{chamfer_distance_l1.1} parent=59 // pred_check_branch
        %444 = sbr.rel (%p442) target = $region64
      $region63: #{chamfer_distance_l1.1} parent=59 // pred_region
        %p445 = scmp.lt.s32.totalorder %s23, 1
        %s446 = scalar_select %p445, %s23, 1
        %p447 = scmp.lt.s32.totalorder %s24, 0
        %s448 = scalar_select %p447, %s24, 0
        %s449 = sadd.s32 %s448, %s446
        %s450 = scalar_lea.vmem %s2, %s449
      $region64: #{chamfer_distance_l1.1} parent=59 // pred_fallthru
        _
      // Predicated region
      $region65: #{chamfer_distance_l1.1} parent=59 // pred_check
        %p451 = pneg %p142
      $region66: #{chamfer_distance_l1.1} parent=59 // pred_check_branch
        %453 = sbr.rel (%p451) target = $region68
      $region67: #{chamfer_distance_l1.1} parent=59 // pred_region
        %p454 = scmp.lt.s32.totalorder %s23, 1
        %s455 = scalar_select %p454, %s23, 1
        %s456 = scalar_lea.vmem %s3, %s455
      $region68: #{chamfer_distance_l1.1} parent=59 // pred_fallthru
        _
    $region60: #{chamfer_distance_l1.1} parent=5 // pred_fallthru
      _
  $region6: #{chamfer_distance_l1.1} parent=0 // loop_footer
    %s14 = sadd.s32 1, %s10
  $region7: #{chamfer_distance_l1.1} parent=0 // loop_footer_branch
    %9 = sbr.rel target = $region3
  $region8: #{chamfer_distance_l1.1} parent=0 // loop_exit
    _

</llo_original>
